<compile_context>
chip_gen: v7x
topology: tpu7x:2x2x1
jax: 0.10.0
libtpu: 0.0.40
codegen_flags: <defaults>
</compile_context>

<pallas_src>
import functools

import jax
import jax.numpy as jnp
from jax.experimental import pallas as pl
from jax.experimental.pallas import tpu as pltpu

LANE = 128          # TPU lane width (last dim of a vreg)
BB_GRAN = 16        # batch-tile granularity (bf16-friendly sublane packing)
MIB = 1024 * 1024


def _round_up(n, m):
    return ((n + m - 1) // m) * m


def _tpu_vmem_bytes():
    """Per-TensorCore VMEM capacity; conservative 64 MiB (v7x-like) fallback."""
    try:
        return int(pltpu.get_tpu_info().vmem_capacity_bytes)
    except Exception:
        return 64 * MIB


@functools.lru_cache(maxsize=1)
def _buffered_single_supported():
    """One-time check that pipeline_mode=pl.Buffered(1) traces & lowers.

    This never executes a kernel; it only traces+lowers a trivial pallas_call.
    """
    if not hasattr(pl, "Buffered"):
        return False
    try:
        def k(x_ref, o_ref):
            o_ref[...] = x_ref[...]

        f = pl.pallas_call(
            k,
            out_shape=jax.ShapeDtypeStruct((8, LANE), jnp.float32),
            grid=(1,),
            in_specs=[pl.BlockSpec((8, LANE), lambda i: (0, 0),
                                   pipeline_mode=pl.Buffered(1))],
            out_specs=pl.BlockSpec((8, LANE), lambda i: (0, 0)),
        )
        jax.jit(f).lower(jax.ShapeDtypeStruct((8, LANE), jnp.float32))
        return True
    except Exception:
        return False


def autoencoder_kernel(x_ref, w1_ref, b1_ref, w2_ref, b2_ref, out_ref):
    """out = sigmoid(relu(x @ W1 + b1) @ W2 + b2) for one batch tile.

    x arrives in its original dtype (f32); the cast to the MXU compute dtype
    happens here (VPU work hidden under the x DMA). Both matmuls accumulate in
    f32; bias add / ReLU / sigmoid run in f32 (v5e has no bf16 VPU/EUP).
    """
    x = x_ref[...].astype(w1_ref.dtype)
    h = jnp.dot(x, w1_ref[...], preferred_element_type=jnp.float32)
    h = jnp.maximum(h + b1_ref[...], 0.0)
    y = jnp.dot(h.astype(w2_ref.dtype), w2_ref[...],
                preferred_element_type=jnp.float32)
    out_ref[...] = jax.nn.sigmoid(y + b2_ref[...]).astype(out_ref.dtype)


def make_autoencoder_forward(w1, b1, w2, b2, *, block_b=None,
                             compute_dtype=jnp.bfloat16, out_dtype=None):
    """Build a jitted forward(x) = sigmoid(relu(x @ w1 + b1) @ w2 + b2).

    w1: [D, H], b1: [H] or [1, H]   (encoder, [in, out] layout)
    w2: [H, D], b2: [D] or [1, D]   (decoder)
    Weights/biases are cast (bf16 for the MXU, f32 biases) once here.
    Set compute_dtype=jnp.float32 for f32-faithful activations.
    """
    w1 = jnp.asarray(w1)
    D, H = w1.shape
    w2 = jnp.asarray(w2)
    assert tuple(w2.shape) == (H, D), (w1.shape, w2.shape)

    # ---- Prepare call-invariant parameters ONCE (no per-call pad/convert).
    w1c = w1.astype(compute_dtype)
    w2c = w2.astype(compute_dtype)
    b1c = jnp.asarray(b1, jnp.float32).reshape(1, H)
    b2c = jnp.asarray(b2, jnp.float32).reshape(1, D)
    w_itemsize = jnp.dtype(compute_dtype).itemsize

    # ---- Generation-aware tiling / VMEM budgets (queried once, trace-time).
    vmem_phys = _tpu_vmem_bytes()
    big_vmem = vmem_phys >= 96 * MIB      # v5e / v6e: 128 MiB VMEM parts
    dual_tc = not big_vmem                # 64 MiB part => v7x (2 TCs / chip)
    if block_b is None:
        block_b = 1024 if big_vmem else 256
    vmem_budget = (96 * MIB) if big_vmem else (52 * MIB)
    vmem_cap = (100 * MIB) if big_vmem else (54 * MIB)

    use_single_buffered_weights = _buffered_single_supported()

    def vmem_estimate(tile_b, out_itemsize):
        # Budget against the configuration that can actually run: double-
        # buffered weights (worst case when Buffered(1) is unavailable).
        w_bytes = 2 * 2 * D * H * w_itemsize
        bias_bytes = 2 * (H + D) * 4
        x_bytes = tile_b * D * 4 * 2              # f32 x tile, double-buffered
        o_bytes = tile_b * D * out_itemsize * 2   # output tile, double-buffered
        h_bytes = tile_b * max(H, LANE) * 4       # live f32 intermediate
        return w_bytes + bias_bytes + x_bytes + o_bytes + h_bytes

    def _forward(x, w1p, b1p, w2p, b2p):
        B, Dx = x.shape
        if Dx != D:
            raise ValueError(f"expected x[..., {D}], got x[..., {Dx}]")
        odt = out_dtype if out_dtype is not None else x.dtype
        o_itemsize = jnp.dtype(odt).itemsize

        # Batch tile: as large as the budget allows, BB_GRAN-aligned.
        bb = min(block_b, _round_up(B, BB_GRAN))
        bb = max(BB_GRAN, _round_up(bb, BB_GRAN))
        # v7x only: keep >= 2 (even-sized) grid steps so both TensorCores get
        # work; v5e/v6e have one TC, so a split would only add overhead.
        if dual_tc and _round_up(B, bb) // bb < 2 and B >= 2 * BB_GRAN:
            bb = max(BB_GRAN,
                     _round_up(_round_up(B, 2 * BB_GRAN) // 2, BB_GRAN))
        while bb > BB_GRAN and vmem_estimate(bb, o_itemsize) > vmem_budget:
            bb = max(BB_GRAN, _round_up(bb // 2, BB_GRAN))
        # TODO(synk): when the resident bf16 weights (2*D*H*itemsize) approach
        # ~half the per-generation VMEM budget, switch to a K/N-streaming grid
        # axis (stream W1/W2 slices, f32 accumulator scratch, pl.when
        # init/finalize, axis "arbitrary") instead of collapsing the batch tile.

        Bp = _round_up(B, bb)
        xp = x if Bp == B else jnp.pad(x, ((0, Bp - B), (0, 0)))
        grid = (Bp // bb,)

        vmem_limit = int(min(vmem_cap,
                             max(32 * MIB, 2 * vmem_estimate(bb, o_itemsize))))

        def const_spec(shape):
            # Index-constant (resident) blocks; single buffer when supported
            # halves their resident VMEM. Budget already assumes 2 buffers.
            if use_single_buffered_weights:
                return pl.BlockSpec(shape, lambda i: (0, 0),
                                    pipeline_mode=pl.Buffered(1))
            return pl.BlockSpec(shape, lambda i: (0, 0))

        cost = pl.CostEstimate(
            flops=4 * Bp * D * H,                     # two (Bp, D, H) matmuls
            transcendentals=Bp * D,                   # sigmoid exp
            bytes_accessed=(Bp * D * 4 + Bp * D * o_itemsize
                            + 2 * D * H * w_itemsize + (D + H) * 4),
        )

        # Feature dims stay unpadded: each weight/bias block equals the full
        # array dims (legal even when D/H aren't lane multiples), so there is
        # no per-call feature pad and no post-kernel feature slice.
        out_p = pl.pallas_call(
            autoencoder_kernel,
            out_shape=jax.ShapeDtypeStruct((Bp, D), odt),
            grid_spec=pltpu.PrefetchScalarGridSpec(
                num_scalar_prefetch=0,
                grid=grid,
                in_specs=[
                    pl.BlockSpec((bb, D), lambda i: (i, 0)),   # x (streamed)
                    const_spec((D, H)),                        # W1 (resident)
                    const_spec((1, H)),                        # b1
                    const_spec((H, D)),                        # W2 (resident)
                    const_spec((1, D)),                        # b2
                ],
                out_specs=pl.BlockSpec((bb, D), lambda i: (i, 0)),
            ),
            compiler_params=pltpu.CompilerParams(
                dimension_semantics=("parallel",),
                vmem_limit_bytes=vmem_limit,
            ),
            cost_estimate=cost,
        )(xp, w1p, b1p, w2p, b2p)
        return out_p if Bp == B else out_p[:B]

    fwd_jit = jax.jit(_forward)

    def forward(x):
        return fwd_jit(x, w1c, b1c, w2c, b2c)

    return forward


def init_params(key, d_in, d_hidden):
    """Deterministic PyTorch-style uniform(-1/sqrt(fan_in), 1/sqrt(fan_in)) init."""
    k1, k2, k3, k4 = jax.random.split(key, 4)
    s1 = 1.0 / jnp.sqrt(d_in)
    s2 = 1.0 / jnp.sqrt(d_hidden)
    w1 = jax.random.uniform(k1, (d_in, d_hidden), jnp.float32, -s1, s1)
    b1 = jax.random.uniform(k2, (1, d_hidden), jnp.float32, -s1, s1)
    w2 = jax.random.uniform(k3, (d_hidden, d_in), jnp.float32, -s2, s2)
    b2 = jax.random.uniform(k4, (1, d_in), jnp.float32, -s2, s2)
    return w1, b1, w2, b2


if __name__ == "__main__":
    key = jax.random.PRNGKey(0)
    kx, kp = jax.random.split(key)

    # Deliberately awkward small sizes (B not a multiple of the batch tile,
    # D/H below 128) to exercise the unpadded-feature / padded-batch paths.
    B, D, H = 6, 64, 32
    x = jax.random.normal(kx, (B, D), dtype=jnp.float32)
    w1, b1, w2, b2 = init_params(kp, D, H)

    forward = make_autoencoder_forward(w1, b1, w2, b2)
    out = jax.block_until_ready(forward(x))

    # Pure-JAX f32 reference. Kernel matmuls run in bf16 (f32 accumulation),
    # so use a correspondingly loose tolerance.
    h_ref = jnp.maximum(x @ w1 + b1, 0.0)
    y_ref = jax.nn.sigmoid(h_ref @ w2 + b2)
    assert out.shape == (B, D)
    assert jnp.allclose(out, y_ref, atol=2e-2, rtol=2e-2), float(
        jnp.max(jnp.abs(out - y_ref)))

    print("KERNEL_OK")
</pallas_src>

<mosaic_0001>
module attributes {stable_mosaic.version = 11 : i64} {
  func.func @autoencoder_kernel(%arg0: i32, %arg1: memref<16x64xf32, #tpu.memory_space<vmem>>, %arg2: memref<64x32xbf16, #tpu.memory_space<vmem>>, %arg3: memref<1x32xf32, #tpu.memory_space<vmem>>, %arg4: memref<32x64xbf16, #tpu.memory_space<vmem>>, %arg5: memref<1x64xf32, #tpu.memory_space<vmem>>, %arg6: memref<16x64xf32, #tpu.memory_space<vmem>>) attributes {dimension_semantics = [#tpu.dimension_semantics<parallel>], iteration_bounds = array<i64: 1>, scalar_prefetch = 0 : i64, scratch_operands = 0 : i64, tpu.core_type = #tpu.core_type<tc>, window_params = [{transform_indices = @transform_0, window_bounds = array<i64: 16, 64>}, {pipeline_mode = #tpu.pipeline_mode<synchronous>, transform_indices = @transform_1, window_bounds = array<i64: 64, 32>}, {pipeline_mode = #tpu.pipeline_mode<synchronous>, transform_indices = @transform_2, window_bounds = array<i64: 1, 32>}, {pipeline_mode = #tpu.pipeline_mode<synchronous>, transform_indices = @transform_3, window_bounds = array<i64: 32, 64>}, {pipeline_mode = #tpu.pipeline_mode<synchronous>, transform_indices = @transform_4, window_bounds = array<i64: 1, 64>}, {transform_indices = @transform_5, window_bounds = array<i64: 16, 64>}]} {
    %c0 = arith.constant 0 : index
    %c0_0 = arith.constant 0 : index
    %0 = vector.load %arg1[%c0, %c0_0] : memref<16x64xf32, #tpu.memory_space<vmem>>, vector<16x64xf32>
    %1 = arith.truncf %0 : vector<16x64xf32> to vector<16x64xbf16>
    %c0_1 = arith.constant 0 : index
    %c0_2 = arith.constant 0 : index
    %2 = vector.load %arg2[%c0_1, %c0_2] : memref<64x32xbf16, #tpu.memory_space<vmem>>, vector<64x32xbf16>
    %cst = arith.constant dense<0.000000e+00> : vector<16x32xf32>
    %3 = tpu.matmul %1, %2, %cst {dimension_numbers = #tpu.dot_dimension_numbers<[1], [0], [0], [1], [0, 0, 1, 1], [], []>} : vector<16x64xbf16>, vector<64x32xbf16>, vector<16x32xf32> -> vector<16x32xf32>
    %c0_3 = arith.constant 0 : index
    %c0_4 = arith.constant 0 : index
    %4 = vector.load %arg3[%c0_3, %c0_4] : memref<1x32xf32, #tpu.memory_space<vmem>>, vector<1x32xf32>
    %5 = vector.broadcast %4 : vector<1x32xf32> to vector<16x32xf32>
    %6 = arith.addf %3, %5 : vector<16x32xf32>
    %cst_5 = arith.constant 0.000000e+00 : f32
    %7 = vector.broadcast %cst_5 : f32 to vector<16x32xf32>
    %8 = arith.maximumf %6, %7 : vector<16x32xf32>
    %9 = arith.truncf %8 : vector<16x32xf32> to vector<16x32xbf16>
    %c0_6 = arith.constant 0 : index
    %c0_7 = arith.constant 0 : index
    %10 = vector.load %arg4[%c0_6, %c0_7] : memref<32x64xbf16, #tpu.memory_space<vmem>>, vector<32x64xbf16>
    %cst_8 = arith.constant dense<0.000000e+00> : vector<16x64xf32>
    %11 = tpu.matmul %9, %10, %cst_8 {dimension_numbers = #tpu.dot_dimension_numbers<[1], [0], [0], [1], [0, 0, 1, 1], [], []>} : vector<16x32xbf16>, vector<32x64xbf16>, vector<16x64xf32> -> vector<16x64xf32>
    %c0_9 = arith.constant 0 : index
    %c0_10 = arith.constant 0 : index
    %12 = vector.load %arg5[%c0_9, %c0_10] : memref<1x64xf32, #tpu.memory_space<vmem>>, vector<1x64xf32>
    %13 = vector.broadcast %12 : vector<1x64xf32> to vector<16x64xf32>
    %14 = arith.addf %11, %13 : vector<16x64xf32>
    %15 = arith.negf %14 : vector<16x64xf32>
    %16 = math.exp %15 : vector<16x64xf32>
    %cst_11 = arith.constant 1.000000e+00 : f32
    %17 = vector.broadcast %cst_11 : f32 to vector<16x64xf32>
    %18 = arith.addf %17, %16 : vector<16x64xf32>
    %19 = arith.divf %17, %18 : vector<16x64xf32>
    %c0_12 = arith.constant 0 : index
    %c0_13 = arith.constant 0 : index
    %20 = vector.load %arg6[%c0_12, %c0_13] : memref<16x64xf32, #tpu.memory_space<vmem>>, vector<16x64xf32>
    tpu.vector_store %arg6[%c0_12, %c0_13], %19 {strides = array<i32>} : memref<16x64xf32, #tpu.memory_space<vmem>>, vector<16x64xf32>,
    return
  }
  func.func @transform_0(%arg0: i32) -> (i32, i32) {
    %c0_i32 = arith.constant 0 : i32
    %c0_i32_0 = arith.constant 0 : i32
    return %arg0, %c0_i32 : i32, i32
  }
  func.func @transform_1(%arg0: i32) -> (i32, i32) {
    %c0_i32 = arith.constant 0 : i32
    %c0_i32_0 = arith.constant 0 : i32
    %c0_i32_1 = arith.constant 0 : i32
    return %c0_i32, %c0_i32_0 : i32, i32
  }
  func.func @transform_2(%arg0: i32) -> (i32, i32) {
    %c0_i32 = arith.constant 0 : i32
    %c0_i32_0 = arith.constant 0 : i32
    %c0_i32_1 = arith.constant 0 : i32
    return %c0_i32, %c0_i32_0 : i32, i32
  }
  func.func @transform_3(%arg0: i32) -> (i32, i32) {
    %c0_i32 = arith.constant 0 : i32
    %c0_i32_0 = arith.constant 0 : i32
    %c0_i32_1 = arith.constant 0 : i32
    return %c0_i32, %c0_i32_0 : i32, i32
  }
  func.func @transform_4(%arg0: i32) -> (i32, i32) {
    %c0_i32 = arith.constant 0 : i32
    %c0_i32_0 = arith.constant 0 : i32
    %c0_i32_1 = arith.constant 0 : i32
    return %c0_i32, %c0_i32_0 : i32, i32
  }
  func.func @transform_5(%arg0: i32) -> (i32, i32) {
    %c0_i32 = arith.constant 0 : i32
    %c0_i32_0 = arith.constant 0 : i32
    return %arg0, %c0_i32 : i32, i32
  }
}

</mosaic_0001>

<llo_original>
// kernel: _forward.1
$region0: #{_forward.1}
  #allocation0 [shape = 'u32[]', space=smem, size = 0x4, offset = 0x4, fixed_abs, tag = 'smem constant byte address 0x4 - core index']
  #allocation1 [shape = 'u32[144,128]{1,0:T(1,128)}', space=vmem, size = 0x12000, scoped, tag = 'internal scratch']
  %s0 = inlined_call_operand.vmem [shape: f32[16,64], index: 0, kind: input, shape index: {}]
  %s1 = inlined_call_operand.vmem [shape: bf16[64,32], index: 1, kind: input, shape index: {}]
  %s2 = inlined_call_operand.vmem [shape: f32[1,32], index: 2, kind: input, shape index: {}]
  %s3 = inlined_call_operand.vmem [shape: bf16[32,64], index: 3, kind: input, shape index: {}]
  %s4 = inlined_call_operand.vmem [shape: f32[1,64], index: 4, kind: input, shape index: {}]
  %s5 = inlined_call_operand.vmem [shape: f32[16,64], index: 5, kind: output, shape index: {}]
  %s6 = sld [smem:[#allocation0]]
  $region30: #{_forward.1} parent=0
    _
  %s8 = ssub.s32 1, %s6
  %s9 = scalar_select 0, %s8, %s6
  // Predicated region
  $region2: #{_forward.1} parent=0 // pred_check
    _
  $region3: #{_forward.1} parent=0 // pred_check_branch
    %11 = sbr.rel (0) target = $region5
  $region4: #{_forward.1} parent=0 // pred_region
    _
  $region5: #{_forward.1} parent=0 // pred_fallthru
    _
  // Predicated region
  $region6: #{_forward.1} parent=0 // pred_check
    _
  $region7: #{_forward.1} parent=0 // pred_check_branch
    %13 = sbr.rel (0) target = $region9
  $region8: #{_forward.1} parent=0 // pred_region
    _
  $region9: #{_forward.1} parent=0 // pred_fallthru
    _
  // Predicated region
  $region10: #{_forward.1} parent=0 // pred_check
    _
  $region11: #{_forward.1} parent=0 // pred_check_branch
    %15 = sbr.rel (0) target = $region13
  $region12: #{_forward.1} parent=0 // pred_region
    _
  $region13: #{_forward.1} parent=0 // pred_fallthru
    _
  // Predicated region
  $region14: #{_forward.1} parent=0 // pred_check
    _
  $region15: #{_forward.1} parent=0 // pred_check_branch
    %17 = sbr.rel (0) target = $region17
  $region16: #{_forward.1} parent=0 // pred_region
    _
  $region17: #{_forward.1} parent=0 // pred_fallthru
    _
  // Predicated region
  $region18: #{_forward.1} parent=0 // pred_check
    _
  $region19: #{_forward.1} parent=0 // pred_check_branch
    %19 = sbr.rel (0) target = $region21
  $region20: #{_forward.1} parent=0 // pred_region
    _
  $region21: #{_forward.1} parent=0 // pred_fallthru
    _
  %v21 = vld [vmem:[%s0] sm:$0xff]
  %v22 = vld [vmem:[%s0 + $0x8] sm:$0xff]
  %v23 = vpack.c.bf16 %v22, %v21
  %v24 = vld [vmem:[%s1] sm:$0xf]
  %v25 = vld [vmem:[%s1 + $0x4] sm:$0xf]
  %v26 = vld [vmem:[%s1 + $0x8] sm:$0xf]
  %v27 = vld [vmem:[%s1 + $0xc] sm:$0xf]
  %v28 = vld [vmem:[%s1 + $0x10] sm:$0xf]
  %v29 = vld [vmem:[%s1 + $0x14] sm:$0xf]
  %v30 = vld [vmem:[%s1 + $0x18] sm:$0xf]
  %v31 = vld [vmem:[%s1 + $0x1c] sm:$0xf]
  %v32 = vld [vmem:[%s2] sm:$0x1]
  %v34 = vlaneseq
  %v35 = vshrl.u32 %v34, 7
  %v36 = vsub.s32 0, %v35
  %v37 = vrot.slane %v32, %v36
  %v47 = vunpack.c.l.b16 %v24
  %v48 = vunpack.c.l.b16 %v25
  %v49 = vunpack.c.l.b16 %v26
  %v50 = vunpack.c.l.b16 %v27
  %v51 = vunpack.c.l.b16 %v28
  %v52 = vunpack.c.l.b16 %v29
  %v53 = vunpack.c.l.b16 %v30
  %v54 = vunpack.c.l.b16 %v31
  %v55 = vpack.c.b16 %v48, %v47
  %v56 = vpack.c.b16 %v50, %v49
  %v57 = vpack.c.b16 %v52, %v51
  %v58 = vpack.c.b16 %v54, %v53
  %vm63 = vcmask 523264
  %v65 = vsel %vm63, %v23, 0
  %67 = vmatprep.subr.bf16.mxu0 0
  %68 = vmatpush1.bf16.msra.mxu0 %v55
  %69 = vmatprep.subr.bf16.mxu0 0
  %70 = vmatpush1.bf16.msra.mxu0 %v56
  %71 = vmatprep.subr.bf16.mxu0 0
  %72 = vmatpush1.bf16.msra.mxu0 %v57
  %73 = vmatprep.subr.bf16.mxu0 0
  %74 = vmatpush1.bf16.msra.mxu0 %v58
  %75 = vmatprep.subr.bf16.mxu0 0
  %76 = vmatpush1.bf16.msra.mxu0 0
  %77 = vmatprep.subr.bf16.mxu0 0
  %78 = vmatpush1.bf16.msra.mxu0 0
  %79 = vmatprep.subr.bf16.mxu0 0
  %80 = vmatpush1.bf16.msra.mxu0 0
  %81 = vmatprep.subr.bf16.mxu0 0
  %82 = vmatpush1.bf16.msra.mxu0 0
  %83 = vmatprep.subr.bf16.mxu0 0
  %84 = vmatpush1.bf16.msra.mxu0 0
  %85 = vmatprep.subr.bf16.mxu0 0
  %86 = vmatpush1.bf16.msra.mxu0 0
  %87 = vmatprep.subr.bf16.mxu0 0
  %88 = vmatpush1.bf16.msra.mxu0 0
  %89 = vmatprep.subr.bf16.mxu0 0
  %90 = vmatpush1.bf16.msra.mxu0 0
  %91 = vmatprep.subr.bf16.mxu0 0
  %92 = vmatpush1.bf16.msra.mxu0 0
  %93 = vmatprep.subr.bf16.mxu0 0
  %94 = vmatpush1.bf16.msra.mxu0 0
  %95 = vmatprep.subr.bf16.mxu0 0
  %96 = vmatpush1.bf16.msra.mxu0 0
  %97 = vmatprep.subr.bf16.mxu0 0
  %98 = vmatpush1.bf16.msra.mxu0 0
  %99 = vmatprep.mubr.bf16.mxu0 0
  %100 = vmatmul.mubr.bf16.gmra.mrb[0].mxu0 %v65
  %v101 = vpop.f32.mrb[0].mxu0
  %v102 = vadd.f32 %v37, %v101
  %v103 = vpop.f32.mrb[0].mxu0
  %v104 = vpop.f32.mrb[0].mxu0
  %v105 = vadd.f32 %v37, %v104
  %v106 = vpop.f32.mrb[0].mxu0
  %107 = vdwg.mxu0
  %v108 = vmax.f32 %v102, 0.0
  %v109 = vmax.f32 %v105, 0.0
  %v110 = vpack.c.bf16 %v109, %v108
  %v111 = vld [vmem:[%s3] sm:$0xf]
  %v112 = vld [vmem:[%s3 + $0x4] sm:$0xf]
  %v113 = vld [vmem:[%s3 + $0x8] sm:$0xf]
  %v114 = vld [vmem:[%s3 + $0xc] sm:$0xf]
  %v115 = vld [vmem:[%s4] sm:$0x1]
  %v117 = vlaneseq
  %v118 = vshrl.u32 %v117, 7
  %v119 = vsub.s32 0, %v118
  %v120 = vrot.slane %v115, %v119
  %v126 = vunpack.c.l.b16 %v111
  %v127 = vunpack.c.l.b16 %v112
  %v128 = vunpack.c.l.b16 %v113
  %v129 = vunpack.c.l.b16 %v114
  %v130 = vpack.c.b16 %v127, %v126
  %v131 = vpack.c.b16 %v129, %v128
  %vm134 = vcmask 261120
  %v136 = vsel %vm134, %v110, 0
  %138 = vmatprep.subr.bf16.mxu0 0
  %139 = vmatpush1.bf16.msra.mxu0 %v130
  %140 = vmatprep.subr.bf16.mxu0 0
  %141 = vmatpush1.bf16.msra.mxu0 %v131
  %142 = vmatprep.subr.bf16.mxu0 0
  %143 = vmatpush1.bf16.msra.mxu0 0
  %144 = vmatprep.subr.bf16.mxu0 0
  %145 = vmatpush1.bf16.msra.mxu0 0
  %146 = vmatprep.subr.bf16.mxu0 0
  %147 = vmatpush1.bf16.msra.mxu0 0
  %148 = vmatprep.subr.bf16.mxu0 0
  %149 = vmatpush1.bf16.msra.mxu0 0
  %150 = vmatprep.subr.bf16.mxu0 0
  %151 = vmatpush1.bf16.msra.mxu0 0
  %152 = vmatprep.subr.bf16.mxu0 0
  %153 = vmatpush1.bf16.msra.mxu0 0
  %154 = vmatprep.subr.bf16.mxu0 0
  %155 = vmatpush1.bf16.msra.mxu0 0
  %156 = vmatprep.subr.bf16.mxu0 0
  %157 = vmatpush1.bf16.msra.mxu0 0
  %158 = vmatprep.subr.bf16.mxu0 0
  %159 = vmatpush1.bf16.msra.mxu0 0
  %160 = vmatprep.subr.bf16.mxu0 0
  %161 = vmatpush1.bf16.msra.mxu0 0
  %162 = vmatprep.subr.bf16.mxu0 0
  %163 = vmatpush1.bf16.msra.mxu0 0
  %164 = vmatprep.subr.bf16.mxu0 0
  %165 = vmatpush1.bf16.msra.mxu0 0
  %166 = vmatprep.subr.bf16.mxu0 0
  %167 = vmatpush1.bf16.msra.mxu0 0
  %168 = vmatprep.subr.bf16.mxu0 0
  %169 = vmatpush1.bf16.msra.mxu0 0
  %170 = vmatprep.mubr.bf16.mxu0 0
  %171 = vmatmul.mubr.bf16.gmra.mrb[0].mxu0 %v136
  %v172 = vpop.f32.mrb[0].mxu0
  %v173 = vadd.f32 %v120, %v172
  %v174 = vpop.f32.mrb[0].mxu0
  %v175 = vpop.f32.mrb[0].mxu0
  %v176 = vadd.f32 %v120, %v175
  %v177 = vpop.f32.mrb[0].mxu0
  %178 = vdwg.mxu0
  %v179 = vxor.u32 %v173, 2147483648
  %v180 = vxor.u32 %v176, 2147483648
  %v181 = vmul.f32 %v179, 1.442695
  %v182 = vpow.pop %v181
  %v183 = vmul.f32 %v180, 1.442695
  %v184 = vpow.pop %v183
  %v185 = vadd.f32 %v182, 1.0
  %v186 = vadd.f32 %v184, 1.0
  %v187 = vrcp.pop %v185
  %v188 = vmul.f32 1.0, %v187
  %v189 = vrcp.pop %v186
  %v190 = vmul.f32 1.0, %v189
  %191 = vst.msk [vmem:[%s5] sm:$0xff] %vm63, %v188
  %192 = vst.msk [vmem:[%s5 + $0x8] sm:$0xff] %vm63, %v190
  // Predicated region
  $region22: #{_forward.1} parent=0 // pred_check
    _
  $region23: #{_forward.1} parent=0 // pred_check_branch
    %194 = sbr.rel (0) target = $region25
  $region24: #{_forward.1} parent=0 // pred_region
    _
  $region25: #{_forward.1} parent=0 // pred_fallthru
    _
  // Predicated region
  $region26: #{_forward.1} parent=0 // pred_check
    _
  $region27: #{_forward.1} parent=0 // pred_check_branch
    %196 = sbr.rel (0) target = $region29
  $region28: #{_forward.1} parent=0 // pred_region
    _
  $region29: #{_forward.1} parent=0 // pred_fallthru
    _

</llo_original>
